<compile_context>
chip_gen: v7x
topology: tpu7x:2x2x1
jax: 0.10.0
libtpu: 0.0.40
codegen_flags: <defaults>
</compile_context>

<pallas_src>
import functools

import jax
import jax.numpy as jnp
import numpy as np
from jax.experimental import pallas as pl
from jax.experimental.pallas import tpu as pltpu


_INV_SQRT2 = np.float32(1.0 / np.sqrt(2.0))


def _round_up(v, m):
    return -(-v // m) * m


def _exact_gelu_f32(x):
    # nn.GELU() default (approximate='none'): 0.5 * x * (1 + erf(x / sqrt(2)))
    return 0.5 * x * (1.0 + jax.lax.erf(x * _INV_SQRT2))


# ---------------------------------------------------------------------------
# Fused kernel body. One grid step processes a (TILE_M, K0) row-tile of x and
# runs the whole layer chain on it:
#   refs = (x, bias_slab, w_0, ..., w_{L-1}, out[, last_hidden])
# ---------------------------------------------------------------------------
def _fused_mlp_kernel(*refs, num_layers: int, emit_last_hidden: bool):
    x_ref = refs[0]
    b_ref = refs[1]                       # (L_pad, N_pad) f32 packed biases
    w_refs = refs[2:2 + num_layers]
    out_refs = refs[2 + num_layers:]
    out_ref = out_refs[0]
    lh_ref = out_refs[1] if emit_last_hidden else None

    h = x_ref[...]
    last_hidden = None
    for i in range(num_layers):
        w = w_refs[i][...]
        n = w.shape[1]
        b = b_ref[i:i + 1, :][:, :n]      # (1, n) f32 bias row, broadcast over rows
        # MXU matmul in the parameter dtype, f32 accumulation.
        y = jnp.dot(h, w, preferred_element_type=jnp.float32) + b
        if i < num_layers - 1:
            y = _exact_gelu_f32(y)        # exact-erf GELU, f32 elementwise math
            last_hidden = y
            h = y.astype(w_refs[i + 1].dtype)   # bf16 operands again if params are bf16
        else:
            h = y

    out_ref[...] = h.astype(out_ref.dtype)
    if emit_last_hidden:
        lh_ref[...] = last_hidden.astype(lh_ref.dtype)


# ---------------------------------------------------------------------------
# Wrapper: batch-tiled pallas_call with resident weights.
# ---------------------------------------------------------------------------
def fused_mlp(x, params, *, return_last_hidden=False, tile_m=512):
    """Run the full FlexibleMLP forward in a single pallas_call.

    x:      (M, layer_sizes[0])
    params: list of (w, b) with w: (in, out) pre-transposed, b: (out,)
    """
    num_layers = len(params)
    M, K0 = x.shape
    emit_last_hidden = return_last_hidden and num_layers >= 2

    widths = [K0] + [w.shape[1] for (w, _) in params]
    n_out = widths[-1]
    n_hidden = widths[-2] if num_layers >= 2 else None
    max_w = max(widths)
    itemsize = jnp.dtype(x.dtype).itemsize

    # ---- batch-tile selection: biggest tile whose double-buffered IO blocks
    #      plus f32 intermediates fit a ~24 MiB activation budget (v7x-safe).
    per_row = (2 * itemsize * (K0 + n_out + (n_hidden if emit_last_hidden else 0))
               + 4 * 4 * max_w)
    act_budget = 24 << 20
    tile_cap = max(8, min(int(tile_m), act_budget // max(per_row, 1)))
    tile = min(_round_up(M, 8), (tile_cap // 8) * 8)
    m_pad = _round_up(M, tile)
    grid = (m_pad // tile,)

    x_in = x if m_pad == M else jnp.pad(x, ((0, m_pad - M), (0, 0)))

    # ---- pack all biases into one lane/sublane-aligned f32 slab (single DMA)
    l_pad = _round_up(max(num_layers, 1), 8)
    n_pad = _round_up(max(w.shape[1] for (w, _) in params), 128)
    rows = [jnp.pad(b.astype(jnp.float32), (0, n_pad - b.shape[0]))[None, :]
            for (_, b) in params]
    b_all = jnp.concatenate(rows, axis=0)
    if l_pad > num_layers:
        b_all = jnp.pad(b_all, ((0, l_pad - num_layers), (0, 0)))

    inputs = [x_in, b_all]
    in_specs = [
        pl.BlockSpec((tile, K0), lambda i: (i, 0)),        # pipelined row tile
        pl.BlockSpec((l_pad, n_pad), lambda i: (0, 0)),    # resident bias slab
    ]
    for (w, _) in params:
        K, N = w.shape
        inputs.append(w)
        in_specs.append(pl.BlockSpec((K, N), lambda i: (0, 0)))  # resident weight

    out_shape = [jax.ShapeDtypeStruct((m_pad, n_out), x.dtype)]
    out_specs = [pl.BlockSpec((tile, n_out), lambda i: (i, 0))]
    if emit_last_hidden:
        out_shape.append(jax.ShapeDtypeStruct((m_pad, n_hidden), x.dtype))
        out_specs.append(pl.BlockSpec((tile, n_hidden), lambda i: (i, 0)))

    # ---- explicit VMEM budget: resident params (x2 buffers) + pipelined IO
    #      blocks (x2 buffers) + f32 intermediate headroom, clamped to 64 MiB.
    param_bytes = sum(2 * w.size * jnp.dtype(w.dtype).itemsize for (w, _) in params)
    param_bytes += 2 * b_all.size * 4
    io_bytes = 2 * tile * itemsize * (K0 + n_out + (n_hidden if emit_last_hidden else 0))
    inter_bytes = 4 * tile * max_w * 4
    vmem_limit = int(min(max(param_bytes + io_bytes + inter_bytes + (2 << 20),
                             16 << 20), 64 << 20))

    results = pl.pallas_call(
        functools.partial(
            _fused_mlp_kernel,
            num_layers=num_layers,
            emit_last_hidden=emit_last_hidden,
        ),
        grid=grid,
        out_shape=tuple(out_shape),
        in_specs=in_specs,
        out_specs=tuple(out_specs),
        compiler_params=pltpu.CompilerParams(
            dimension_semantics=("parallel",),   # megacore shard on v7x
            vmem_limit_bytes=vmem_limit,
        ),
    )(*inputs)

    out = results[0][:M]
    if return_last_hidden:
        # num_layers == 1 => no hidden layer => None (matches the PyTorch loop).
        last_hidden = results[1][:M] if emit_last_hidden else None
        return out, last_hidden
    return out


# ---------------------------------------------------------------------------
# FlexibleMLP: parameter construction + forward pass using the fused kernel.
# ---------------------------------------------------------------------------
def init_flexible_mlp(key, layer_sizes, scale=1.0, bias_scale=0.0,
                      dtype=jnp.float32):
    """Mirrors FlexibleMLP.reset_parameters:
       weight ~ N(0, (scale/sqrt(fan_in))^2), bias ~ N(0, (bias_scale/sqrt(fan_in))^2).
       Weights are stored pre-transposed as (in, out)."""
    params = []
    for i in range(len(layer_sizes) - 1):
        fan_in, fan_out = layer_sizes[i], layer_sizes[i + 1]
        key, kw, kb = jax.random.split(key, 3)
        w_std = scale / np.sqrt(fan_in)
        b_std = bias_scale / np.sqrt(fan_in)
        w = (jax.random.normal(kw, (fan_in, fan_out), dtype=jnp.float32) * w_std).astype(dtype)
        b = (jax.random.normal(kb, (fan_out,), dtype=jnp.float32) * b_std).astype(jnp.float32)
        params.append((w, b))
    return params


def flexible_mlp_forward(params, x, return_last_hidden=False, tile_m=512):
    """Forward pass: GELU after every layer except the last (identity)."""
    return fused_mlp(x, params, return_last_hidden=return_last_hidden, tile_m=tile_m)


def flexible_mlp_reference(params, x):
    """Pure-JAX reference for correctness checking (f32 math)."""
    h = x.astype(jnp.float32)
    for (w, b) in params[:-1]:
        h = jax.nn.gelu(h @ w.astype(jnp.float32) + b.astype(jnp.float32),
                        approximate=False)
    w, b = params[-1]
    return h @ w.astype(jnp.float32) + b.astype(jnp.float32)


if __name__ == "__main__":
    layer_sizes = [32, 64, 64, 16]   # FlexibleMLP(layers=[32, 64, 64, 16])
    batch = 8

    key = jax.random.PRNGKey(0)
    key, kx, kx2 = jax.random.split(key, 3)
    x = jax.random.normal(kx, (batch, layer_sizes[0]), dtype=jnp.float32)

    params = init_flexible_mlp(key, layer_sizes, scale=1.0, bias_scale=0.5)

    # --- toy-shape check (single tile), with last_hidden ---------------------
    out, last_hidden = flexible_mlp_forward(params, x, return_last_hidden=True)
    out = jax.block_until_ready(out)
    last_hidden = jax.block_until_ready(last_hidden)

    assert out.shape == (batch, layer_sizes[-1])
    assert last_hidden.shape == (batch, layer_sizes[-2])

    ref = flexible_mlp_reference(params, x)
    np.testing.assert_allclose(np.asarray(out), np.asarray(ref),
                               rtol=1e-5, atol=1e-5)

    h = x
    for (w, b) in params[:-1]:
        h = jax.nn.gelu(h @ w + b, approximate=False)
    np.testing.assert_allclose(np.asarray(last_hidden), np.asarray(h),
                               rtol=1e-5, atol=1e-5)

    # --- larger ragged batch: exercises the batch grid (3 tiles) + masking ---
    xb = jax.random.normal(kx2, (300, layer_sizes[0]), dtype=jnp.float32)
    out_b = jax.block_until_ready(fused_mlp(xb, params, tile_m=128))
    np.testing.assert_allclose(np.asarray(out_b),
                               np.asarray(flexible_mlp_reference(params, xb)),
                               rtol=1e-5, atol=1e-5)

    # --- bf16 MXU-operand path (f32 accumulation + f32 GELU inside kernel) ---
    params_bf16 = [(w.astype(jnp.bfloat16), b) for (w, b) in params]
    x_bf16 = x.astype(jnp.bfloat16)
    out_bf = jax.block_until_ready(fused_mlp(x_bf16, params_bf16))
    ref_bf = flexible_mlp_reference(params_bf16, x_bf16)
    np.testing.assert_allclose(np.asarray(out_bf, dtype=np.float32),
                               np.asarray(ref_bf), rtol=5e-2, atol=5e-2)

    print("KERNEL_OK")
</pallas_src>

<mosaic_0001>
module attributes {stable_mosaic.version = 11 : i64} {
  func.func @_fused_mlp_kernel(%arg0: i32, %arg1: memref<8x32xf32, #tpu.memory_space<vmem>>, %arg2: memref<8x128xf32, #tpu.memory_space<vmem>>, %arg3: memref<32x64xf32, #tpu.memory_space<vmem>>, %arg4: memref<64x64xf32, #tpu.memory_space<vmem>>, %arg5: memref<64x16xf32, #tpu.memory_space<vmem>>, %arg6: memref<8x16xf32, #tpu.memory_space<vmem>>, %arg7: memref<8x64xf32, #tpu.memory_space<vmem>>) attributes {dimension_semantics = [#tpu.dimension_semantics<parallel>], iteration_bounds = array<i64: 1>, scalar_prefetch = 0 : i64, scratch_operands = 0 : i64, tpu.core_type = #tpu.core_type<tc>, window_params = [{transform_indices = @transform_0, window_bounds = array<i64: 8, 32>}, {pipeline_mode = #tpu.pipeline_mode<synchronous>, transform_indices = @transform_1, window_bounds = array<i64: 8, 128>}, {pipeline_mode = #tpu.pipeline_mode<synchronous>, transform_indices = @transform_2, window_bounds = array<i64: 32, 64>}, {pipeline_mode = #tpu.pipeline_mode<synchronous>, transform_indices = @transform_3, window_bounds = array<i64: 64, 64>}, {pipeline_mode = #tpu.pipeline_mode<synchronous>, transform_indices = @transform_4, window_bounds = array<i64: 64, 16>}, {transform_indices = @transform_5, window_bounds = array<i64: 8, 16>}, {transform_indices = @transform_6, window_bounds = array<i64: 8, 64>}]} {
    %c0 = arith.constant 0 : index
    %c0_0 = arith.constant 0 : index
    %0 = vector.load %arg1[%c0, %c0_0] : memref<8x32xf32, #tpu.memory_space<vmem>>, vector<8x32xf32>
    %c0_1 = arith.constant 0 : index
    %c0_2 = arith.constant 0 : index
    %1 = vector.load %arg3[%c0_1, %c0_2] : memref<32x64xf32, #tpu.memory_space<vmem>>, vector<32x64xf32>
    %c0_3 = arith.constant 0 : index
    %c0_4 = arith.constant 0 : index
    %2 = vector.load %arg2[%c0_3, %c0_4] : memref<8x128xf32, #tpu.memory_space<vmem>>, vector<1x128xf32>
    %3 = vector.extract_strided_slice %2 {offsets = [0, 0], sizes = [1, 64], strides = [1, 1]} : vector<1x128xf32> to vector<1x64xf32>
    %cst = arith.constant dense<0.000000e+00> : vector<8x64xf32>
    %4 = tpu.matmul %0, %1, %cst {dimension_numbers = #tpu.dot_dimension_numbers<[1], [0], [0], [1], [0, 0, 1, 1], [], []>} : vector<8x32xf32>, vector<32x64xf32>, vector<8x64xf32> -> vector<8x64xf32>
    %5 = vector.broadcast %3 : vector<1x64xf32> to vector<8x64xf32>
    %6 = arith.addf %4, %5 : vector<8x64xf32>
    %cst_5 = arith.constant 5.000000e-01 : f32
    %7 = vector.broadcast %cst_5 : f32 to vector<8x64xf32>
    %8 = arith.mulf %7, %6 : vector<8x64xf32>
    %cst_6 = arith.constant 0.707106769 : f32
    %9 = vector.broadcast %cst_6 : f32 to vector<8x64xf32>
    %10 = arith.mulf %6, %9 : vector<8x64xf32>
    %11 = math.erf %10 : vector<8x64xf32>
    %cst_7 = arith.constant 1.000000e+00 : f32
    %12 = vector.broadcast %cst_7 : f32 to vector<8x64xf32>
    %13 = arith.addf %12, %11 : vector<8x64xf32>
    %14 = arith.mulf %8, %13 : vector<8x64xf32>
    %c0_8 = arith.constant 0 : index
    %c0_9 = arith.constant 0 : index
    %15 = vector.load %arg4[%c0_8, %c0_9] : memref<64x64xf32, #tpu.memory_space<vmem>>, vector<64x64xf32>
    %c1 = arith.constant 1 : index
    %c0_10 = arith.constant 0 : index
    %16 = vector.load %arg2[%c1, %c0_10] : memref<8x128xf32, #tpu.memory_space<vmem>>, vector<1x128xf32>
    %17 = vector.extract_strided_slice %16 {offsets = [0, 0], sizes = [1, 64], strides = [1, 1]} : vector<1x128xf32> to vector<1x64xf32>
    %cst_11 = arith.constant dense<0.000000e+00> : vector<8x64xf32>
    %18 = tpu.matmul %14, %15, %cst_11 {dimension_numbers = #tpu.dot_dimension_numbers<[1], [0], [0], [1], [0, 0, 1, 1], [], []>} : vector<8x64xf32>, vector<64x64xf32>, vector<8x64xf32> -> vector<8x64xf32>
    %19 = vector.broadcast %17 : vector<1x64xf32> to vector<8x64xf32>
    %20 = arith.addf %18, %19 : vector<8x64xf32>
    %cst_12 = arith.constant 5.000000e-01 : f32
    %21 = vector.broadcast %cst_12 : f32 to vector<8x64xf32>
    %22 = arith.mulf %21, %20 : vector<8x64xf32>
    %cst_13 = arith.constant 0.707106769 : f32
    %23 = vector.broadcast %cst_13 : f32 to vector<8x64xf32>
    %24 = arith.mulf %20, %23 : vector<8x64xf32>
    %25 = math.erf %24 : vector<8x64xf32>
    %cst_14 = arith.constant 1.000000e+00 : f32
    %26 = vector.broadcast %cst_14 : f32 to vector<8x64xf32>
    %27 = arith.addf %26, %25 : vector<8x64xf32>
    %28 = arith.mulf %22, %27 : vector<8x64xf32>
    %c0_15 = arith.constant 0 : index
    %c0_16 = arith.constant 0 : index
    %29 = vector.load %arg5[%c0_15, %c0_16] : memref<64x16xf32, #tpu.memory_space<vmem>>, vector<64x16xf32>
    %c2 = arith.constant 2 : index
    %c0_17 = arith.constant 0 : index
    %30 = vector.load %arg2[%c2, %c0_17] : memref<8x128xf32, #tpu.memory_space<vmem>>, vector<1x128xf32>
    %31 = vector.extract_strided_slice %30 {offsets = [0, 0], sizes = [1, 16], strides = [1, 1]} : vector<1x128xf32> to vector<1x16xf32>
    %cst_18 = arith.constant dense<0.000000e+00> : vector<8x16xf32>
    %32 = tpu.matmul %28, %29, %cst_18 {dimension_numbers = #tpu.dot_dimension_numbers<[1], [0], [0], [1], [0, 0, 1, 1], [], []>} : vector<8x64xf32>, vector<64x16xf32>, vector<8x16xf32> -> vector<8x16xf32>
    %33 = vector.broadcast %31 : vector<1x16xf32> to vector<8x16xf32>
    %34 = arith.addf %32, %33 : vector<8x16xf32>
    %c0_19 = arith.constant 0 : index
    %c0_20 = arith.constant 0 : index
    %35 = vector.load %arg6[%c0_19, %c0_20] : memref<8x16xf32, #tpu.memory_space<vmem>>, vector<8x16xf32>
    tpu.vector_store %arg6[%c0_19, %c0_20], %34 {strides = array<i32>} : memref<8x16xf32, #tpu.memory_space<vmem>>, vector<8x16xf32>,
    %c0_21 = arith.constant 0 : index
    %c0_22 = arith.constant 0 : index
    %36 = vector.load %arg7[%c0_21, %c0_22] : memref<8x64xf32, #tpu.memory_space<vmem>>, vector<8x64xf32>
    tpu.vector_store %arg7[%c0_21, %c0_22], %28 {strides = array<i32>} : memref<8x64xf32, #tpu.memory_space<vmem>>, vector<8x64xf32>,
    return
  }
  func.func @transform_0(%arg0: i32) -> (i32, i32) {
    %c0_i32 = arith.constant 0 : i32
    %c0_i32_0 = arith.constant 0 : i32
    return %arg0, %c0_i32 : i32, i32
  }
  func.func @transform_1(%arg0: i32) -> (i32, i32) {
    %c0_i32 = arith.constant 0 : i32
    %c0_i32_0 = arith.constant 0 : i32
    %c0_i32_1 = arith.constant 0 : i32
    return %c0_i32, %c0_i32_0 : i32, i32
  }
  func.func @transform_2(%arg0: i32) -> (i32, i32) {
    %c0_i32 = arith.constant 0 : i32
    %c0_i32_0 = arith.constant 0 : i32
    %c0_i32_1 = arith.constant 0 : i32
    return %c0_i32, %c0_i32_0 : i32, i32
  }
  func.func @transform_3(%arg0: i32) -> (i32, i32) {
    %c0_i32 = arith.constant 0 : i32
    %c0_i32_0 = arith.constant 0 : i32
    %c0_i32_1 = arith.constant 0 : i32
    return %c0_i32, %c0_i32_0 : i32, i32
  }
  func.func @transform_4(%arg0: i32) -> (i32, i32) {
    %c0_i32 = arith.constant 0 : i32
    %c0_i32_0 = arith.constant 0 : i32
    %c0_i32_1 = arith.constant 0 : i32
    return %c0_i32, %c0_i32_0 : i32, i32
  }
  func.func @transform_5(%arg0: i32) -> (i32, i32) {
    %c0_i32 = arith.constant 0 : i32
    %c0_i32_0 = arith.constant 0 : i32
    return %arg0, %c0_i32 : i32, i32
  }
  func.func @transform_6(%arg0: i32) -> (i32, i32) {
    %c0_i32 = arith.constant 0 : i32
    %c0_i32_0 = arith.constant 0 : i32
    return %arg0, %c0_i32 : i32, i32
  }
}

</mosaic_0001>

<llo_original>
// kernel: tpu_custom_call.1
$region0: #{tpu_custom_call.1}
  #allocation0 [shape = 'u32[]', space=smem, size = 0x4, offset = 0x4, fixed_abs, tag = 'smem constant byte address 0x4 - core index']
  #allocation1 [shape = 'u32[144,128]{1,0:T(1,128)}', space=vmem, size = 0x12000, scoped, tag = 'internal scratch']
  %s0 = inlined_call_operand.vmem [shape: f32[8,32], index: 0, kind: input, shape index: {}]
  %s1 = inlined_call_operand.vmem [shape: f32[8,128], index: 1, kind: input, shape index: {}]
  %s2 = inlined_call_operand.hbm [shape: f32[32,64], index: 2, kind: input, shape index: {}]
  %s3 = inlined_call_operand.vmem [shape: f32[64,64], index: 3, kind: input, shape index: {}]
  %s4 = inlined_call_operand.vmem [shape: f32[64,16], index: 4, kind: input, shape index: {}]
  %s5 = inlined_call_operand.hbm [shape: f32[8,16], index: 5, kind: output, shape index: {0}]
  %s6 = inlined_call_operand.hbm [shape: f32[8,64], index: 6, kind: output, shape index: {1}]
  %7 = xla_tuple %s5, %s6
  %s8 = sld [smem:[#allocation0]]
  $region42: #{tpu_custom_call.1} parent=0
    _
  %s10 = ssub.s32 1, %s8
  %s11 = scalar_select 0, %s10, %s8
  $region1: #{tpu_custom_call.1} parent=0
    #allocation2 [shape = 'u8[16384]{0}', space=vmem, size = 0x4000, scoped, tag = 'input window, operand 2, single buffered']
    #allocation3 [shape = 's32[1]{0}', space=sflag, size = 0x4, scoped, tag = 'scoped memory for tpu_custom_call.1']
    #allocation4 [shape = 's32[1]{0}', space=sflag, size = 0x4, scoped, tag = 'scoped memory for tpu_custom_call.1']
    #allocation5 [shape = 'u8[4096]{0}', space=vmem, size = 0x1000, scoped, tag = 'output window, operand 0, single buffered']
    #allocation6 [shape = 'u8[4096]{0}', space=vmem, size = 0x1000, scoped, tag = 'output window, operand 1, single buffered']
    #allocation7 [shape = 's32[1]{0}', space=sflag, size = 0x4, scoped, tag = 'scoped memory for tpu_custom_call.1']
    %12 = vsyncpa [#allocation3], 0
    %13 = vsyncpa [#allocation4], 0
    %14 = vsyncpa [#allocation7], 0
    // Predicated region
    $region2: #{tpu_custom_call.1} parent=1 // pred_check
      _
    $region3: #{tpu_custom_call.1} parent=1 // pred_check_branch
      %16 = sbr.rel (0) target = $region5
    $region4: #{tpu_custom_call.1} parent=1 // pred_region
      _
    $region5: #{tpu_custom_call.1} parent=1 // pred_fallthru
      _
    // Predicated region
    $region6: #{tpu_custom_call.1} parent=1 // pred_check
      _
    $region7: #{tpu_custom_call.1} parent=1 // pred_check_branch
      %18 = sbr.rel (0) target = $region9
    $region8: #{tpu_custom_call.1} parent=1 // pred_region
      _
    $region9: #{tpu_custom_call.1} parent=1 // pred_fallthru
      _
    // Predicated region
    $region10: #{tpu_custom_call.1} parent=1 // pred_check
      _
    $region11: #{tpu_custom_call.1} parent=1 // pred_check_branch
      %20 = sbr.rel (0) target = $region13
    $region12: #{tpu_custom_call.1} parent=1 // pred_region
      %s22 = ssub.s32 512, 512
      %23 = vsyncadd [#allocation3], %s22
      %s24 = sshll.u32 [#allocation2], 4
      %s25 = int_to_ptr.vmem [resolvable:$true] %s24
      %30 = dma.hbm_to_vmem [thread:$0]  %s2, 512, %s25, [#allocation3], 128, 128, 8
    $region13: #{tpu_custom_call.1} parent=1 // pred_fallthru
      _
    // Predicated region
    $region14: #{tpu_custom_call.1} parent=1 // pred_check
      _
    $region15: #{tpu_custom_call.1} parent=1 // pred_check_branch
      %32 = sbr.rel (0) target = $region17
    $region16: #{tpu_custom_call.1} parent=1 // pred_region
      _
    $region17: #{tpu_custom_call.1} parent=1 // pred_fallthru
      _
    // Predicated region
    $region18: #{tpu_custom_call.1} parent=1 // pred_check
      _
    $region19: #{tpu_custom_call.1} parent=1 // pred_check_branch
      %34 = sbr.rel (0) target = $region21
    $region20: #{tpu_custom_call.1} parent=1 // pred_region
      _
    $region21: #{tpu_custom_call.1} parent=1 // pred_fallthru
      _
    // Predicated region
    $region22: #{tpu_custom_call.1} parent=1 // pred_check
      _
    $region23: #{tpu_custom_call.1} parent=1 // pred_check_branch
      %36 = sbr.rel (0) target = $region25
    $region24: #{tpu_custom_call.1} parent=1 // pred_region
      %37 = dma.done [#allocation3], 512
    $region25: #{tpu_custom_call.1} parent=1 // pred_fallthru
      _
    %v38 = vld [vmem:[%s0] sm:$0xff]
    %v39 = vld [vmem:[#allocation2] sm:$0xff]
    %v40 = vld [vmem:[#allocation2 + $0x8] sm:$0xff]
    %v41 = vld [vmem:[#allocation2 + $0x10] sm:$0xff]
    %v42 = vld [vmem:[#allocation2 + $0x18] sm:$0xff]
    %v43 = vld [vmem:[%s1] sm:$0x1]
    %v44 = vlaneseq
    %v45 = vshrl.u32 %v44, 7
    %v46 = vsub.s32 0, %v45
    %v47 = vrot.slane %v43, %v46
    %vm48 = vcmask 261120
    %v50 = vsel %vm48, %v38, 0
    %52 = vmatprep.subr.mxu0 0.0
    %53 = vmatpush1.msra.mxu0 %v39
    %54 = vmatprep.subr.mxu0 0.0
    %55 = vmatpush1.msra.mxu0 %v40
    %56 = vmatprep.subr.mxu0 0.0
    %57 = vmatpush1.msra.mxu0 %v41
    %58 = vmatprep.subr.mxu0 0.0
    %59 = vmatpush1.msra.mxu0 %v42
    %60 = vmatprep.subr.mxu0 0.0
    %61 = vmatpush1.msra.mxu0 0.0
    %62 = vmatprep.subr.mxu0 0.0
    %63 = vmatpush1.msra.mxu0 0.0
    %64 = vmatprep.subr.mxu0 0.0
    %65 = vmatpush1.msra.mxu0 0.0
    %66 = vmatprep.subr.mxu0 0.0
    %67 = vmatpush1.msra.mxu0 0.0
    %68 = vmatprep.subr.mxu0 0.0
    %69 = vmatpush1.msra.mxu0 0.0
    %70 = vmatprep.subr.mxu0 0.0
    %71 = vmatpush1.msra.mxu0 0.0
    %72 = vmatprep.subr.mxu0 0.0
    %73 = vmatpush1.msra.mxu0 0.0
    %74 = vmatprep.subr.mxu0 0.0
    %75 = vmatpush1.msra.mxu0 0.0
    %76 = vmatprep.subr.mxu0 0.0
    %77 = vmatpush1.msra.mxu0 0.0
    %78 = vmatprep.subr.mxu0 0.0
    %79 = vmatpush1.msra.mxu0 0.0
    %80 = vmatprep.subr.mxu0 0.0
    %81 = vmatpush1.msra.mxu0 0.0
    %82 = vmatprep.subr.mxu0 0.0
    %83 = vmatpush1.msra.mxu0 0.0
    %84 = vmatprep.subr.mxu0 0.0
    %85 = vmatpush1.msra.mxu0 0.0
    %86 = vmatprep.subr.mxu0 0.0
    %87 = vmatpush1.msra.mxu0 0.0
    %88 = vmatprep.subr.mxu0 0.0
    %89 = vmatpush1.msra.mxu0 0.0
    %90 = vmatprep.subr.mxu0 0.0
    %91 = vmatpush1.msra.mxu0 0.0
    %92 = vmatprep.subr.mxu0 0.0
    %93 = vmatpush1.msra.mxu0 0.0
    %94 = vmatprep.subr.mxu0 0.0
    %95 = vmatpush1.msra.mxu0 0.0
    %96 = vmatprep.subr.mxu0 0.0
    %97 = vmatpush1.msra.mxu0 0.0
    %98 = vmatprep.subr.mxu0 0.0
    %99 = vmatpush1.msra.mxu0 0.0
    %100 = vmatprep.subr.mxu0 0.0
    %101 = vmatpush1.msra.mxu0 0.0
    %102 = vmatprep.subr.mxu0 0.0
    %103 = vmatpush1.msra.mxu0 0.0
    %104 = vmatprep.subr.mxu0 0.0
    %105 = vmatpush1.msra.mxu0 0.0
    %106 = vmatprep.subr.mxu0 0.0
    %107 = vmatpush1.msra.mxu0 0.0
    %108 = vmatprep.subr.mxu0 0.0
    %109 = vmatpush1.msra.mxu0 0.0
    %110 = vmatprep.subr.mxu0 0.0
    %111 = vmatpush1.msra.mxu0 0.0
    %112 = vmatprep.subr.mxu0 0.0
    %113 = vmatpush1.msra.mxu0 0.0
    %114 = vmatprep.subr.mxu0 0.0
    %115 = vmatpush1.msra.mxu0 0.0
    %116 = vmatprep.mubr.f32.mxu0 0.0
    %117 = vmatmul.mubr.f32.gmra.mrb[0].mxu0 %v50
    %v118 = vpop.f32.mrb[0].mxu0
    %v119 = vadd.f32 %v47, %v118
    %v120 = vpop.f32.mrb[0].mxu0
    %121 = vdwg.mxu0
    %v122 = vmul.f32 %v119, 0.5
    %v123 = vmul.f32 %v119, 0.70710677
    %v124 = verf.f32.pop %v123
    %v125 = vadd.f32 %v124, 1.0
    %v126 = vmul.f32 %v122, %v125
    %v127 = vld [vmem:[%s3] sm:$0xff]
    %v128 = vld [vmem:[%s3 + $0x8] sm:$0xff]
    %v129 = vld [vmem:[%s3 + $0x10] sm:$0xff]
    %v130 = vld [vmem:[%s3 + $0x18] sm:$0xff]
    %v131 = vld [vmem:[%s3 + $0x20] sm:$0xff]
    %v132 = vld [vmem:[%s3 + $0x28] sm:$0xff]
    %v133 = vld [vmem:[%s3 + $0x30] sm:$0xff]
    %v134 = vld [vmem:[%s3 + $0x38] sm:$0xff]
    %v135 = vld [vmem:[%s1 + $0x1] sm:$0x1]
    %v136 = vlaneseq
    %v137 = vshrl.u32 %v136, 7
    %v138 = vsub.s32 0, %v137
    %v139 = vrot.slane %v135, %v138
    %vm140 = vcmask 523264
    %v142 = vsel %vm140, %v126, 0
    %144 = vmatprep.subr.mxu0 0.0
    %145 = vmatpush1.msra.mxu0 %v127
    %146 = vmatprep.subr.mxu0 0.0
    %147 = vmatpush1.msra.mxu0 %v128
    %148 = vmatprep.subr.mxu0 0.0
    %149 = vmatpush1.msra.mxu0 %v129
    %150 = vmatprep.subr.mxu0 0.0
    %151 = vmatpush1.msra.mxu0 %v130
    %152 = vmatprep.subr.mxu0 0.0
    %153 = vmatpush1.msra.mxu0 %v131
    %154 = vmatprep.subr.mxu0 0.0
    %155 = vmatpush1.msra.mxu0 %v132
    %156 = vmatprep.subr.mxu0 0.0
    %157 = vmatpush1.msra.mxu0 %v133
    %158 = vmatprep.subr.mxu0 0.0
    %159 = vmatpush1.msra.mxu0 %v134
    %160 = vmatprep.subr.mxu0 0.0
    %161 = vmatpush1.msra.mxu0 0.0
    %162 = vmatprep.subr.mxu0 0.0
    %163 = vmatpush1.msra.mxu0 0.0
    %164 = vmatprep.subr.mxu0 0.0
    %165 = vmatpush1.msra.mxu0 0.0
    %166 = vmatprep.subr.mxu0 0.0
    %167 = vmatpush1.msra.mxu0 0.0
    %168 = vmatprep.subr.mxu0 0.0
    %169 = vmatpush1.msra.mxu0 0.0
    %170 = vmatprep.subr.mxu0 0.0
    %171 = vmatpush1.msra.mxu0 0.0
    %172 = vmatprep.subr.mxu0 0.0
    %173 = vmatpush1.msra.mxu0 0.0
    %174 = vmatprep.subr.mxu0 0.0
    %175 = vmatpush1.msra.mxu0 0.0
    %176 = vmatprep.subr.mxu0 0.0
    %177 = vmatpush1.msra.mxu0 0.0
    %178 = vmatprep.subr.mxu0 0.0
    %179 = vmatpush1.msra.mxu0 0.0
    %180 = vmatprep.subr.mxu0 0.0
    %181 = vmatpush1.msra.mxu0 0.0
    %182 = vmatprep.subr.mxu0 0.0
    %183 = vmatpush1.msra.mxu0 0.0
    %184 = vmatprep.subr.mxu0 0.0
    %185 = vmatpush1.msra.mxu0 0.0
    %186 = vmatprep.subr.mxu0 0.0
    %187 = vmatpush1.msra.mxu0 0.0
    %188 = vmatprep.subr.mxu0 0.0
    %189 = vmatpush1.msra.mxu0 0.0
    %190 = vmatprep.subr.mxu0 0.0
    %191 = vmatpush1.msra.mxu0 0.0
    %192 = vmatprep.subr.mxu0 0.0
    %193 = vmatpush1.msra.mxu0 0.0
    %194 = vmatprep.subr.mxu0 0.0
    %195 = vmatpush1.msra.mxu0 0.0
    %196 = vmatprep.subr.mxu0 0.0
    %197 = vmatpush1.msra.mxu0 0.0
    %198 = vmatprep.subr.mxu0 0.0
    %199 = vmatpush1.msra.mxu0 0.0
    %200 = vmatprep.subr.mxu0 0.0
    %201 = vmatpush1.msra.mxu0 0.0
    %202 = vmatprep.subr.mxu0 0.0
    %203 = vmatpush1.msra.mxu0 0.0
    %204 = vmatprep.subr.mxu0 0.0
    %205 = vmatpush1.msra.mxu0 0.0
    %206 = vmatprep.subr.mxu0 0.0
    %207 = vmatpush1.msra.mxu0 0.0
    %208 = vmatprep.mubr.f32.mxu0 0.0
    %209 = vmatmul.mubr.f32.gmra.mrb[0].mxu0 %v142
    %v210 = vpop.f32.mrb[0].mxu0
    %v211 = vadd.f32 %v139, %v210
    %v212 = vpop.f32.mrb[0].mxu0
    %213 = vdwg.mxu0
    %v214 = vmul.f32 %v211, 0.5
    %v215 = vmul.f32 %v211, 0.70710677
    %v216 = verf.f32.pop %v215
    %v217 = vadd.f32 %v216, 1.0
    %v218 = vmul.f32 %v214, %v217
    %v219 = vld [vmem:[%s4] sm:$0xff]
    %v220 = vld [vmem:[%s4 + $0x8] sm:$0xff]
    %v221 = vld [vmem:[%s4 + $0x10] sm:$0xff]
    %v222 = vld [vmem:[%s4 + $0x18] sm:$0xff]
    %v223 = vld [vmem:[%s4 + $0x20] sm:$0xff]
    %v224 = vld [vmem:[%s4 + $0x28] sm:$0xff]
    %v225 = vld [vmem:[%s4 + $0x30] sm:$0xff]
    %v226 = vld [vmem:[%s4 + $0x38] sm:$0xff]
    %v227 = vld [vmem:[%s1 + $0x2] sm:$0x1]
    %v228 = vlaneseq
    %v229 = vshrl.u32 %v228, 7
    %v230 = vsub.s32 0, %v229
    %v231 = vrot.slane %v227, %v230
    %v233 = vsel %vm140, %v218, 0
    %235 = vmatprep.subr.mxu0 0.0
    %236 = vmatpush1.msra.mxu0 %v219
    %237 = vmatprep.subr.mxu0 0.0
    %238 = vmatpush1.msra.mxu0 %v220
    %239 = vmatprep.subr.mxu0 0.0
    %240 = vmatpush1.msra.mxu0 %v221
    %241 = vmatprep.subr.mxu0 0.0
    %242 = vmatpush1.msra.mxu0 %v222
    %243 = vmatprep.subr.mxu0 0.0
    %244 = vmatpush1.msra.mxu0 %v223
    %245 = vmatprep.subr.mxu0 0.0
    %246 = vmatpush1.msra.mxu0 %v224
    %247 = vmatprep.subr.mxu0 0.0
    %248 = vmatpush1.msra.mxu0 %v225
    %249 = vmatprep.subr.mxu0 0.0
    %250 = vmatpush1.msra.mxu0 %v226
    %251 = vmatprep.subr.mxu0 0.0
    %252 = vmatpush1.msra.mxu0 0.0
    %253 = vmatprep.subr.mxu0 0.0
    %254 = vmatpush1.msra.mxu0 0.0
    %255 = vmatprep.subr.mxu0 0.0
    %256 = vmatpush1.msra.mxu0 0.0
    %257 = vmatprep.subr.mxu0 0.0
    %258 = vmatpush1.msra.mxu0 0.0
    %259 = vmatprep.subr.mxu0 0.0
    %260 = vmatpush1.msra.mxu0 0.0
    %261 = vmatprep.subr.mxu0 0.0
    %262 = vmatpush1.msra.mxu0 0.0
    %263 = vmatprep.subr.mxu0 0.0
    %264 = vmatpush1.msra.mxu0 0.0
    %265 = vmatprep.subr.mxu0 0.0
    %266 = vmatpush1.msra.mxu0 0.0
    %267 = vmatprep.subr.mxu0 0.0
    %268 = vmatpush1.msra.mxu0 0.0
    %269 = vmatprep.subr.mxu0 0.0
    %270 = vmatpush1.msra.mxu0 0.0
    %271 = vmatprep.subr.mxu0 0.0
    %272 = vmatpush1.msra.mxu0 0.0
    %273 = vmatprep.subr.mxu0 0.0
    %274 = vmatpush1.msra.mxu0 0.0
    %275 = vmatprep.subr.mxu0 0.0
    %276 = vmatpush1.msra.mxu0 0.0
    %277 = vmatprep.subr.mxu0 0.0
    %278 = vmatpush1.msra.mxu0 0.0
    %279 = vmatprep.subr.mxu0 0.0
    %280 = vmatpush1.msra.mxu0 0.0
    %281 = vmatprep.subr.mxu0 0.0
    %282 = vmatpush1.msra.mxu0 0.0
    %283 = vmatprep.subr.mxu0 0.0
    %284 = vmatpush1.msra.mxu0 0.0
    %285 = vmatprep.subr.mxu0 0.0
    %286 = vmatpush1.msra.mxu0 0.0
    %287 = vmatprep.subr.mxu0 0.0
    %288 = vmatpush1.msra.mxu0 0.0
    %289 = vmatprep.subr.mxu0 0.0
    %290 = vmatpush1.msra.mxu0 0.0
    %291 = vmatprep.subr.mxu0 0.0
    %292 = vmatpush1.msra.mxu0 0.0
    %293 = vmatprep.subr.mxu0 0.0
    %294 = vmatpush1.msra.mxu0 0.0
    %295 = vmatprep.subr.mxu0 0.0
    %296 = vmatpush1.msra.mxu0 0.0
    %297 = vmatprep.subr.mxu0 0.0
    %298 = vmatpush1.msra.mxu0 0.0
    %299 = vmatprep.mubr.f32.mxu0 0.0
    %300 = vmatmul.mubr.f32.gmra.mrb[0].mxu0 %v233
    %v301 = vpop.f32.mrb[0].mxu0
    %v302 = vadd.f32 %v231, %v301
    %v303 = vpop.f32.mrb[0].mxu0
    %304 = vdwg.mxu0
    %vm305 = vcmask 130048
    %306 = vst.msk [vmem:[#allocation5] sm:$0xff] %vm305, %v302
    %307 = vst.msk [vmem:[#allocation6] sm:$0xff] %vm140, %v218
    // Predicated region
    $region26: #{tpu_custom_call.1} parent=1 // pred_check
      _
    $region27: #{tpu_custom_call.1} parent=1 // pred_check_branch
      %309 = sbr.rel (0) target = $region29
    $region28: #{tpu_custom_call.1} parent=1 // pred_region
      %s311 = ssub.s32 128, 128
      %312 = vsyncadd [#allocation4], %s311
      %s314 = sshll.u32 [#allocation5], 4
      %s315 = int_to_ptr.vmem [resolvable:$true] %s314
      %317 = dma.vmem_to_hbm [thread:$0]  %s315, 128, %s5, [#allocation4]
    $region29: #{tpu_custom_call.1} parent=1 // pred_fallthru
      _
    // Predicated region
    $region30: #{tpu_custom_call.1} parent=1 // pred_check
      _
    $region31: #{tpu_custom_call.1} parent=1 // pred_check_branch
      %319 = sbr.rel (0) target = $region33
    $region32: #{tpu_custom_call.1} parent=1 // pred_region
      %s321 = ssub.s32 128, 128
      %322 = vsyncadd [#allocation7], %s321
      %s324 = sshll.u32 [#allocation6], 4
      %s325 = int_to_ptr.vmem [resolvable:$true] %s324
      %327 = dma.vmem_to_hbm [thread:$0]  %s325, 128, %s6, [#allocation7]
    $region33: #{tpu_custom_call.1} parent=1 // pred_fallthru
      _
    // Predicated region
    $region34: #{tpu_custom_call.1} parent=1 // pred_check
      _
    $region35: #{tpu_custom_call.1} parent=1 // pred_check_branch
      %329 = sbr.rel (0) target = $region37
    $region36: #{tpu_custom_call.1} parent=1 // pred_region
      %330 = dma.done [#allocation4], 128
    $region37: #{tpu_custom_call.1} parent=1 // pred_fallthru
      _
    // Predicated region
    $region38: #{tpu_custom_call.1} parent=1 // pred_check
      _
    $region39: #{tpu_custom_call.1} parent=1 // pred_check_branch
      %332 = sbr.rel (0) target = $region41
    $region40: #{tpu_custom_call.1} parent=1 // pred_region
      %333 = dma.done [#allocation7], 128
    $region41: #{tpu_custom_call.1} parent=1 // pred_fallthru
      _
    %334 = vsyncpa [#allocation3], 1
    %335 = vsyncpa [#allocation4], 1
    %336 = vsyncpa [#allocation7], 1

</llo_original>
